<compile_context>
chip_gen: v6e
topology: v6e:2x2x1
jax: 0.10.0
libtpu: 0.0.40
codegen_flags: <defaults>
</compile_context>

<pallas_src>
import functools
import math

import numpy as np
import jax
import jax.numpy as jnp
from jax import lax
from jax.experimental import pallas as pl
from jax.experimental.pallas import tpu as pltpu

LEVELS = (2, 3, 4)


def _round_up(v, m):
    return -(-v // m) * m


# ---------------------------------------------------------------------------
# Host-side constant operators (per single image, cached on (H, W)).
# ---------------------------------------------------------------------------
def _adaptive_windows(in_size, out_size):
    """PyTorch AdaptiveMaxPool2d window [start, end) per output index."""
    starts = [(i * in_size) // out_size for i in range(out_size)]
    ends = [-(-((i + 1) * in_size) // out_size) for i in range(out_size)]
    return starts, ends


def _axis_weights(in_size, out_size):
    """1-D bilinear interpolation matrix (out_size, in_size), align_corners=True."""
    w = np.zeros((out_size, in_size), np.float32)
    for o in range(out_size):
        src = 0.0 if out_size == 1 else o * (in_size - 1) / (out_size - 1)
        i0 = min(int(math.floor(src)), in_size - 1)
        i1 = min(i0 + 1, in_size - 1)
        f = src - i0
        w[o, i0] += 1.0 - f
        w[o, i1] += f
    return w


def _pool_selector_stacked(H, W, hl, wl):
    """One-hot selector (S, T*Dpad): tap t's candidates live in a lane-aligned
    128-wide (Dpad) column slice; max over taps == adaptive max pool."""
    hs, he = _adaptive_windows(H, hl)
    ws, we = _adaptive_windows(W, wl)
    kh = max(e - s for s, e in zip(hs, he))
    kw = max(e - s for s, e in zip(ws, we))
    D = hl * wl
    DPAD = _round_up(D, 128)
    T = kh * kw
    S = H * W
    G = np.zeros((S, T * DPAD), np.float32)
    for a in range(kh):
        for b in range(kw):
            t = a * kw + b
            for i in range(hl):
                r = hs[i] + min(a, he[i] - hs[i] - 1)        # clamp inside window
                for j in range(wl):
                    c = ws[j] + min(b, we[j] - ws[j] - 1)
                    G[r * W + c, t * DPAD + i * wl + j] = 1.0
    return G, T, D, DPAD


def _upsample_operator(hl, wl, H2, W2, DPAD, P):
    """(DPAD, P) bilinear align_corners=True operator; padded rows/cols are 0."""
    uh = _axis_weights(hl, H2)                               # (H2, hl)
    uw = _axis_weights(wl, W2)                               # (W2, wl)
    m = np.einsum('yh,xw->hwyx', uh, uw).reshape(hl * wl, H2 * W2)
    out = np.zeros((DPAD, P), np.float32)
    out[:hl * wl, :H2 * W2] = m
    return out


@functools.lru_cache(maxsize=None)
def _spp_constants(H, W):
    """Per-image pooling selectors / upsample operators for all levels (bf16)."""
    H2, W2 = H // 2, W // 2
    P = _round_up(H2 * W2, 128)
    gs, ms, Ts, DPADs = [], [], [], []
    for level in LEVELS:
        hl, wl = H // level, W // level
        G, T, _, DPAD = _pool_selector_stacked(H, W, hl, wl)
        M = _upsample_operator(hl, wl, H2, W2, DPAD, P)
        gs.append(jnp.asarray(G, jnp.bfloat16))
        ms.append(jnp.asarray(M, jnp.bfloat16))
        Ts.append(T)
        DPADs.append(DPAD)
    return tuple(gs), tuple(ms), tuple(Ts), tuple(DPADs), P


@functools.lru_cache(maxsize=None)
def _roll_shift_sign():
    """Resolve pltpu.roll's rotation direction once with a tiny probe kernel.

    Returns +1 if pltpu.roll(x, s)[i] == x[(i - s) % n] (np.roll convention),
    else -1.  Used to pick the lane-shift sign for the 3x3-conv taps so the
    kernel is correct regardless of the convention.
    """
    def probe(x_ref, o_ref):
        o_ref[...] = pltpu.roll(x_ref[...], 1, 1)

    x = jnp.broadcast_to(lax.iota(jnp.float32, 128)[None, :], (8, 128))
    y = pl.pallas_call(probe, out_shape=jax.ShapeDtypeStruct((8, 128), jnp.float32))(x)
    return 1 if int(y[0, 1]) == 0 else -1


# ---------------------------------------------------------------------------
# Pallas kernel (one grid program per batch element).
# ---------------------------------------------------------------------------
def _make_spp_kernel(C, H2, W2, S2, P, Ts, DPADs, roll_sign):
    f32, bf16 = jnp.float32, jnp.bfloat16
    offs = [(dy, dx) for dy in (-1, 0, 1) for dx in (-1, 0, 1)]   # t = (ky*3+kx)

    def kernel(x_ref, g2_ref, g3_ref, g4_ref, m2_ref, m3_ref, m4_ref,
               wf2_ref, wf3_ref, wf4_ref, bf_ref,
               w2b_ref, b2b_ref, w2c_ref, b2c_ref, w2d_ref, b2d_ref, o_ref):
        x = x_ref[0]                                          # (C, S) bf16

        def pool_up(g_ref, m_ref, T, DPAD):
            # one wide selector matmul, then lane-aligned tree max over the T taps
            cand = jnp.dot(x, g_ref[...], preferred_element_type=f32)   # (C, T*DPAD)
            parts = [cand[:, t * DPAD:(t + 1) * DPAD] for t in range(T)]
            while len(parts) > 1:
                nxt = [jnp.maximum(parts[i], parts[i + 1])
                       for i in range(0, len(parts) - 1, 2)]
                if len(parts) % 2:
                    nxt.append(parts[-1])
                parts = nxt
            pooled = parts[0].astype(bf16)                    # (C, DPAD)
            # bilinear upsample (align_corners=True); padded rows/cols of M are 0
            return jnp.dot(pooled, m_ref[...], preferred_element_type=f32)  # (C, P)

        up2 = pool_up(g2_ref, m2_ref, Ts[0], DPADs[0])
        up3 = pool_up(g3_ref, m3_ref, Ts[1], DPADs[1])
        up4 = pool_up(g4_ref, m4_ref, Ts[2], DPADs[2])

        # fused 1x1: rows [0:C] = c1*conv1(spp), rows [C:2C] = conv2[0](spp);
        # spp concat avoided via per-level (2C, C) block matmuls.
        yf = (jnp.dot(wf2_ref[...], up2.astype(bf16), preferred_element_type=f32)
              + jnp.dot(wf3_ref[...], up3.astype(bf16), preferred_element_type=f32)
              + jnp.dot(wf4_ref[...], up4.astype(bf16), preferred_element_type=f32)
              + bf_ref[...])                                  # (2C, P) f32
        y1 = yf[:C, :]                                        # c1 * conv1(spp)
        z = yf[C:, :]                                         # conv2[0](spp)

        # 3x3 boundary masks (shared by both 3x3 convs). Lanes >= S2 (pad) never
        # feed a valid unmasked output, so their contents are irrelevant.
        lane = lax.broadcasted_iota(jnp.int32, (1, P), 1)
        yy = lane // W2
        xx = lane - yy * W2
        masks = [(yy + dy >= 0) & (yy + dy < H2) & (xx + dx >= 0) & (xx + dx < W2)
                 for dy, dx in offs]

        def conv3x3(w9_ref, b_ref, zin):
            # lane shifts (pltpu.roll, XLU) + masks replace the old shift matmuls;
            # the 9 channel taps are stacked into one K=9C MXU matmul.
            zb = zin.astype(bf16)
            taps = []
            for t, (dy, dx) in enumerate(offs):
                d = dy * W2 + dx                              # want neigh[p] = z[p + d]
                sh = zb if d == 0 else pltpu.roll(zb, (-roll_sign * d) % P, 1)
                taps.append(jnp.where(masks[t], sh, jnp.zeros_like(sh)))
            z9 = jnp.concatenate(taps, axis=0)                # (9C, P) bf16
            return jnp.dot(w9_ref[...], z9, preferred_element_type=f32) + b_ref[...]

        z = conv3x3(w2b_ref, b2b_ref, z)                      # conv2[1]  3x3 pad 1
        z = jnp.dot(w2c_ref[...], z.astype(bf16),
                    preferred_element_type=f32) + b2c_ref[...]  # conv2[2]  1x1
        z = conv3x3(w2d_ref, b2d_ref, z)                      # conv2[3]  3x3 (c2 folded)

        o_ref[0] = (y1 + z)[:, :S2].astype(o_ref.dtype)

    return kernel


def spp_max_pallas(x, params):
    """x: (N, C, H, W) f32.  Returns (N, C, H//2, W//2) f32."""
    N, C, H, W = x.shape
    assert H % 2 == 0 and W % 2 == 0
    H2, W2 = H // 2, W // 2
    S, S2 = H * W, H2 * W2
    C3 = 3 * C
    f32, bf16 = jnp.float32, jnp.bfloat16

    gs, ms, Ts, DPADs, P = _spp_constants(H, W)

    c1 = params['c1'].astype(f32)
    c2 = params['c2'].astype(f32)

    # conv1 (scaled by c1) and conv2[0] fused into one (2C, 3C) weight, split
    # into per-level (2C, C) input-channel blocks.
    wf = jnp.concatenate([c1 * params['conv1_w'].reshape(C, C3),
                          params['conv2_0_w'].reshape(C, C3)], axis=0)
    wf_blocks = [wf[:, l * C:(l + 1) * C].astype(bf16) for l in range(3)]
    bfused = jnp.concatenate([c1 * params['conv1_b'],
                              params['conv2_0_b']]).reshape(2 * C, 1).astype(f32)

    def taps9(w):  # (Cout, Cin, 3, 3) -> (Cout, 9*Cin), tap t=(ky*3+kx) at cols [t*Cin,(t+1)*Cin)
        return jnp.transpose(w, (0, 2, 3, 1)).reshape(w.shape[0], 9 * w.shape[1])

    w2b = taps9(params['conv2_1_w']).astype(bf16)
    b2b = params['conv2_1_b'].reshape(C, 1).astype(f32)
    w2c = params['conv2_2_w'].reshape(C, C).astype(bf16)
    b2c = params['conv2_2_b'].reshape(C, 1).astype(f32)
    w2d = (c2 * taps9(params['conv2_3_w'])).astype(bf16)      # c2 folded
    b2d = (c2 * params['conv2_3_b']).reshape(C, 1).astype(f32)

    x3 = x.reshape(N, C, S).astype(bf16)                      # per-image lane-dense layout

    kernel = _make_spp_kernel(C, H2, W2, S2, P, Ts, DPADs, _roll_shift_sign())

    const_inputs = [gs[0], gs[1], gs[2], ms[0], ms[1], ms[2],
                    wf_blocks[0], wf_blocks[1], wf_blocks[2], bfused,
                    w2b, b2b, w2c, b2c, w2d, b2d]

    in_specs = [pl.BlockSpec((1, C, S), lambda n: (n, 0, 0))]
    for a in const_inputs:                                    # constants: whole array, revisited
        in_specs.append(pl.BlockSpec(a.shape, lambda n: (0, 0)))
    out_spec = pl.BlockSpec((1, C, S2), lambda n: (n, 0, 0))

    # VMEM budget from actual buffer sizes (+ headroom for in-kernel temporaries).
    const_bytes = sum(int(np.prod(a.shape)) * a.dtype.itemsize for a in const_inputs)
    block_bytes = 2 * (C * S * 2) + 2 * (C * S2 * 4) + 2 * const_bytes
    vmem_limit = int(min(block_bytes + (16 << 20), 120 << 20))

    out = pl.pallas_call(
        kernel,
        grid=(N,),
        out_shape=jax.ShapeDtypeStruct((N, C, S2), jnp.float32),
        in_specs=in_specs,
        out_specs=out_spec,
        compiler_params=pltpu.CompilerParams(
            dimension_semantics=("parallel",),
            vmem_limit_bytes=vmem_limit),
    )(x3, *const_inputs)

    return out.reshape(N, C, H2, W2)


# ---------------------------------------------------------------------------
# Pure-JAX f32 reference (for verification).
# ---------------------------------------------------------------------------
def spp_max_ref(x, params):
    N, C, H, W = x.shape
    H2, W2 = H // 2, W // 2
    outs = []
    for level in LEVELS:
        hl, wl = H // level, W // level
        hs, he = _adaptive_windows(H, hl)
        ws, we = _adaptive_windows(W, wl)
        rows = []
        for i in range(hl):
            cols = [jnp.max(x[:, :, hs[i]:he[i], ws[j]:we[j]], axis=(2, 3))
                    for j in range(wl)]
            rows.append(jnp.stack(cols, axis=-1))
        pooled = jnp.stack(rows, axis=-2)                     # (N, C, hl, wl)
        uh = jnp.asarray(_axis_weights(hl, H2))
        uw = jnp.asarray(_axis_weights(wl, W2))
        outs.append(jnp.einsum('yh,nchw,xw->ncyx', uh, pooled, uw))
    spp = jnp.concatenate(outs, axis=1)                       # (N, 3C, H2, W2)

    def conv(z, w, b, pad):
        y = lax.conv_general_dilated(z, w, (1, 1), [(pad, pad), (pad, pad)],
                                     dimension_numbers=('NCHW', 'OIHW', 'NCHW'))
        return y + b.reshape(1, -1, 1, 1)

    y1 = conv(spp, params['conv1_w'], params['conv1_b'], 0)
    y2 = conv(spp, params['conv2_0_w'], params['conv2_0_b'], 0)
    y2 = conv(y2, params['conv2_1_w'], params['conv2_1_b'], 1)
    y2 = conv(y2, params['conv2_2_w'], params['conv2_2_b'], 0)
    y2 = conv(y2, params['conv2_3_w'], params['conv2_3_b'], 1)
    return params['c1'] * y1 + params['c2'] * y2


if __name__ == "__main__":
    key = jax.random.PRNGKey(0)
    ks = jax.random.split(key, 11)
    N, dim, H, W = 2, 32, 16, 16
    s = 0.1

    x = jax.random.normal(ks[0], (N, dim, H, W), jnp.float32)
    params = {
        'conv1_w': jax.random.normal(ks[1], (dim, 3 * dim, 1, 1), jnp.float32) * s,
        'conv1_b': jax.random.normal(ks[2], (dim,), jnp.float32) * s,
        'conv2_0_w': jax.random.normal(ks[3], (dim, 3 * dim, 1, 1), jnp.float32) * s,
        'conv2_0_b': jax.random.normal(ks[4], (dim,), jnp.float32) * s,
        'conv2_1_w': jax.random.normal(ks[5], (dim, dim, 3, 3), jnp.float32) * s,
        'conv2_1_b': jax.random.normal(ks[6], (dim,), jnp.float32) * s,
        'conv2_2_w': jax.random.normal(ks[7], (dim, dim, 1, 1), jnp.float32) * s,
        'conv2_2_b': jax.random.normal(ks[8], (dim,), jnp.float32) * s,
        'conv2_3_w': jax.random.normal(ks[9], (dim, dim, 3, 3), jnp.float32) * s,
        'conv2_3_b': jax.random.normal(ks[10], (dim,), jnp.float32) * s,
        'c1': jnp.float32(0.5),
        'c2': jnp.float32(0.5),
    }

    out = jax.block_until_ready(spp_max_pallas(x, params))
    ref = spp_max_ref(x, params)
    assert out.shape == (N, dim, H // 2, W // 2), out.shape
    max_err = float(jnp.max(jnp.abs(out - ref)))
    # bf16 MXU operands with f32 accumulation -> loose tolerance vs f32 reference.
    assert jnp.allclose(out, ref, atol=5e-2, rtol=5e-2), f"max_err={max_err}"
    print("KERNEL_OK")
</pallas_src>

<mosaic_0001>
module attributes {stable_mosaic.version = 11 : i64} {
  func.func @probe(%arg0: memref<8x128xf32, #tpu.memory_space<vmem>>, %arg1: memref<8x128xf32, #tpu.memory_space<vmem>>) attributes {dimension_semantics = [], scalar_prefetch = 0 : i64, scratch_operands = 0 : i64, tpu.core_type = #tpu.core_type<tc>} {
    %c0 = arith.constant 0 : index
    %c0_0 = arith.constant 0 : index
    %0 = vector.load %arg0[%c0, %c0_0] : memref<8x128xf32, #tpu.memory_space<vmem>>, vector<8x128xf32>
    %c1_i32 = arith.constant 1 : i32
    %1 = tpu.dynamic_rotate %0 by %c1_i32 dim 1 : vector<8x128xf32>, i32 -> vector<8x128xf32>
    %c0_1 = arith.constant 0 : index
    %c0_2 = arith.constant 0 : index
    %2 = vector.load %arg1[%c0_1, %c0_2] : memref<8x128xf32, #tpu.memory_space<vmem>>, vector<8x128xf32>
    tpu.vector_store %arg1[%c0_1, %c0_2], %1 {strides = array<i32>} : memref<8x128xf32, #tpu.memory_space<vmem>>, vector<8x128xf32>,
    return
  }
}

</mosaic_0001>

<llo_original>
// kernel: tpu_custom_call.1
$region0: #{tpu_custom_call.1}
  #allocation0 [shape = 'u32[]', space=smem, size = 0x4, offset = 0x4, fixed_abs, tag = 'smem constant byte address 0x4 - core index']
  #allocation1 [shape = 'u32[144,128]{1,0:T(1,128)}', space=vmem, size = 0x12000, scoped, tag = 'internal scratch']
  %s0 = inlined_call_operand.hbm [shape: f32[8,128], index: 0, kind: input, shape index: {}]
  %s1 = inlined_call_operand.hbm [shape: f32[8,128], index: 1, kind: output, shape index: {}]
  %s2 = sld [smem:[#allocation0]]
  $region18: #{tpu_custom_call.1} parent=0
    _
  %s4 = ssub.s32 1, %s2
  %s5 = scalar_select 0, %s4, %s2
  $region1: #{tpu_custom_call.1} parent=0
    #allocation2 [shape = 'u8[4096]{0}', space=vmem, size = 0x1000, scoped, tag = 'input window, operand 0, single buffered']
    #allocation3 [shape = 's32[1]{0}', space=sflag, size = 0x4, scoped, tag = 'scoped memory for tpu_custom_call.1']
    #allocation4 [shape = 's32[1]{0}', space=sflag, size = 0x4, scoped, tag = 'scoped memory for tpu_custom_call.1']
    #allocation5 [shape = 'u8[4096]{0}', space=vmem, size = 0x1000, scoped, tag = 'output window, operand 0, single buffered']
    %6 = vsyncpa [#allocation3], 0
    %7 = vsyncpa [#allocation4], 0
    // Predicated region
    $region2: #{tpu_custom_call.1} parent=1 // pred_check
      _
    $region3: #{tpu_custom_call.1} parent=1 // pred_check_branch
      %9 = sbr.rel (0) target = $region5
    $region4: #{tpu_custom_call.1} parent=1 // pred_region
      %s11 = ssub.s32 128, 128
      %12 = vsyncadd [#allocation3], %s11
      %s14 = sshll.u32 [#allocation2], 4
      %s15 = int_to_ptr.vmem [resolvable:$true] %s14
      %17 = dma.hbm_to_vmem [thread:$0]  %s0, 128, %s15, [#allocation3]
    $region5: #{tpu_custom_call.1} parent=1 // pred_fallthru
      _
    // Predicated region
    $region6: #{tpu_custom_call.1} parent=1 // pred_check
      _
    $region7: #{tpu_custom_call.1} parent=1 // pred_check_branch
      %19 = sbr.rel (0) target = $region9
    $region8: #{tpu_custom_call.1} parent=1 // pred_region
      %20 = dma.done [#allocation3], 128
    $region9: #{tpu_custom_call.1} parent=1 // pred_fallthru
      _
    %v21 = vld [vmem:[#allocation2] sm:$0xff]
    %22 = vrot.lane.b32.xlu0 %v21, 1
    %v23 = vpop.permute.xlu0 %22
    %24 = vst [vmem:[#allocation5] sm:$0xff] %v23
    // Predicated region
    $region10: #{tpu_custom_call.1} parent=1 // pred_check
      _
    $region11: #{tpu_custom_call.1} parent=1 // pred_check_branch
      %26 = sbr.rel (0) target = $region13
    $region12: #{tpu_custom_call.1} parent=1 // pred_region
      %s28 = ssub.s32 128, 128
      %29 = vsyncadd [#allocation4], %s28
      %s31 = sshll.u32 [#allocation5], 4
      %s32 = int_to_ptr.vmem [resolvable:$true] %s31
      %34 = dma.vmem_to_hbm [thread:$0]  %s32, 128, %s1, [#allocation4]
    $region13: #{tpu_custom_call.1} parent=1 // pred_fallthru
      _
    // Predicated region
    $region14: #{tpu_custom_call.1} parent=1 // pred_check
      _
    $region15: #{tpu_custom_call.1} parent=1 // pred_check_branch
      %36 = sbr.rel (0) target = $region17
    $region16: #{tpu_custom_call.1} parent=1 // pred_region
      %37 = dma.done [#allocation4], 128
    $region17: #{tpu_custom_call.1} parent=1 // pred_fallthru
      _
    %38 = vsyncpa [#allocation3], 1
    %39 = vsyncpa [#allocation4], 1

</llo_original>
